<compile_context>
chip_gen: v6e
topology: v6e:2x2x1
jax: 0.10.0
libtpu: 0.0.40
codegen_flags: <defaults>
</compile_context>

<pallas_src>
import jax
import jax.numpy as jnp
from jax import lax
from jax.experimental import pallas as pl
from jax.experimental.pallas import tpu as pltpu


def _round_up(x, m):
    return (x + m - 1) // m * m


# A (M, K) . B (N, K) -> (M, N): contract dim 1 with dim 1 (MXU-native
# transposed-RHS contraction; avoids materializing W.T in HBM).
_CONTRACT_T = (((1,), (1,)), ((), ()))


def _mlp_head_kernel(x_ref, w1_ref, b1_ref, w2_ref, b2_ref, w3_ref, b3_ref,
                     out_ref):
    """Fused 3-layer MLP regression head on one batch tile (Dropout = identity)."""
    # Cast x to the MXU feed dtype in-kernel (single HBM read of x at its
    # native dtype; accumulation is f32 either way).
    x = x_ref[...].astype(w1_ref.dtype)                       # (TB, F)

    # Layer 1: Linear + ReLU (f32 accumulate on the MXU; bias/relu on the VPU).
    h1 = lax.dot_general(x, w1_ref[...], _CONTRACT_T,
                         preferred_element_type=jnp.float32)
    h1 = jnp.maximum(h1 + b1_ref[...], 0.0)                   # (TB, H1) f32

    # Layer 2: Linear + ReLU.
    h2 = lax.dot_general(h1.astype(w2_ref.dtype), w2_ref[...], _CONTRACT_T,
                         preferred_element_type=jnp.float32)
    h2 = jnp.maximum(h2 + b2_ref[...], 0.0)                   # (TB, H2) f32

    # Final Linear (H2 -> 1), kept in f32. Contracting w3 (1, H2) against
    # h2 (TB, H2) emits a lane-dense (1, TB) row directly (MXU has large
    # slack), so the output block needs no (TB,1) lane padding or masked
    # single-lane stores, and no explicit (TB,1)->(1,TB) relayout.
    y = lax.dot_general(w3_ref[...], h2, _CONTRACT_T,
                        preferred_element_type=jnp.float32) + b3_ref[...]
    out_ref[...] = y.astype(out_ref.dtype)                    # (1, TB)


def _vmem_capacity_bytes():
    """Physical VMEM of the local chip (64 MiB v7x, 128 MiB v5e/v6e)."""
    try:
        cap = getattr(pltpu.get_tpu_info(), "vmem_capacity_bytes", None)
        if cap:
            return int(cap)
    except Exception:
        pass
    return 64 * 1024 * 1024   # conservative fallback (v7x-sized)


def _pick_batch_tile(B, F, H1, H2, x_itemsize, w_itemsize, budget_bytes):
    """Largest batch tile whose lane-padded VMEM footprint fits the budget."""
    lane = lambda n: _round_up(max(n, 1), 128)
    sub = lambda n: _round_up(max(n, 1), 8)
    Fp, H1p, H2p = lane(F), lane(H1), lane(H2)
    # Grid-resident operands (the default pipeline still allocates 2 buffers).
    resident = 2 * (sub(H1) * Fp * w_itemsize          # w1
                    + sub(H2) * H1p * w_itemsize       # w2
                    + sub(1) * H2p * 4                 # w3 (f32)
                    + sub(1) * (H1p + H2p + lane(1)) * 4)   # b1, b2, b3 (f32)
    per_row = (2 * Fp * x_itemsize       # double-buffered x stream
               + Fp * w_itemsize         # in-kernel MXU-dtype copy of x tile
               + H1p * (4 + w_itemsize)  # h1 (f32) + its layer-2 cast
               + H2p * 4                 # h2 (f32)
               + 2 * 8 * 4)              # (1, TB) out block: 8 sublanes, 2 bufs
    if B <= 8:
        return B                         # single block equal to the full batch
    tb = max(8, min(8192, (budget_bytes - resident) // per_row)) // 8 * 8
    tb = min(tb, max(8, (B // 8) * 8))   # never larger than the batch
    if B >= 16:
        # Keep >= 2 batch tiles so both v7x TensorCores get a "parallel" slice.
        tb = min(tb, _round_up((B + 1) // 2, 8))
    return tb


def regression_head_forward(x, params, *, mxu_dtype=jnp.bfloat16):
    """RegressionHead forward (inference; Dropout = identity).

    x: (B, ...) encoder output; nn.Flatten -> (B, F). Passed to the kernel in
       its native dtype (no wrapper-side cast / pad -> single HBM pass).
    params: PyTorch nn.Linear layout, w_i: (out, in), b_i: (out,).
    mxu_dtype: dtype fed to the layer-1/2 MXU contractions (accumulation is
       always f32; the final H2->1 layer and all biases stay f32). Use
       jnp.float32 to match PyTorch numerics; bf16 is the perf default and its
       rounding impact is signed off against the f32 reference in __main__.
    """
    B = x.shape[0]
    x_flat = x.reshape(B, -1)                         # nn.Flatten(); native dtype
    F = x_flat.shape[1]

    # Weights keep PyTorch (out, in) layout: the MXU contracts the transposed
    # RHS natively, so no wrapper-side `.T` HBM pass. (If a Mosaic dump ever
    # shows a per-grid-step relayout of w1/w2, pre-transpose once at
    # parameter-load time instead.)
    w1 = params["w1"].astype(mxu_dtype)               # (H1, F)
    w2 = params["w2"].astype(mxu_dtype)               # (H2, H1)
    w3 = params["w3"].reshape(1, -1).astype(jnp.float32)   # (1, H2), f32
    b1 = params["b1"].reshape(1, -1).astype(jnp.float32)
    b2 = params["b2"].reshape(1, -1).astype(jnp.float32)
    b3 = params["b3"].reshape(1, -1).astype(jnp.float32)
    H1, H2 = w1.shape[0], w2.shape[0]

    vmem_cap = _vmem_capacity_bytes()
    budget = int(vmem_cap * 0.45)   # ~29 MiB on v7x (64 MiB), ~58 MiB on v5e/v6e
    limit = int(vmem_cap * 0.75)    # raise Mosaic's scoped-VMEM ceiling to match
    tb = _pick_batch_tile(B, F, H1, H2, x_flat.dtype.itemsize,
                          jnp.dtype(mxu_dtype).itemsize, budget)
    num_tiles = pl.cdiv(B, tb)

    resident = lambda i: (0, 0)     # weights/biases stay in VMEM across the grid
    w_bytes = jnp.dtype(mxu_dtype).itemsize
    cost = pl.CostEstimate(
        flops=2 * num_tiles * tb * (F * H1 + H1 * H2 + H2),
        transcendentals=0,
        bytes_accessed=int(B * F * x_flat.dtype.itemsize
                           + (w1.size + w2.size) * w_bytes
                           + (w3.size + b1.size + b2.size + b3.size) * 4
                           + num_tiles * tb * 4))

    out = pl.pallas_call(
        _mlp_head_kernel,
        out_shape=jax.ShapeDtypeStruct((num_tiles, 1, tb), jnp.float32),
        grid=(num_tiles,),
        in_specs=[
            pl.BlockSpec((tb, F), lambda i: (i, 0)),   # stream x over the batch
            pl.BlockSpec((H1, F), resident),
            pl.BlockSpec((1, H1), resident),
            pl.BlockSpec((H2, H1), resident),
            pl.BlockSpec((1, H2), resident),
            pl.BlockSpec((1, H2), resident),
            pl.BlockSpec((1, 1), resident),
        ],
        # Lane-dense output: one (1, TB) f32 row per grid step.
        out_specs=pl.BlockSpec((None, 1, tb), lambda i: (i, 0, 0)),
        compiler_params=pltpu.CompilerParams(
            dimension_semantics=("parallel",),   # shard batch tiles across TCs (v7x)
            vmem_limit_bytes=limit,
        ),
        cost_estimate=cost,
    )(x_flat, w1, b1, w2, b2, w3, b3)

    # Tail rows of the (masked) partial last tile are sliced off here.
    return out.reshape(num_tiles * tb)[:B].reshape(B, 1)


def _reference_forward(x, params):
    """Pure-JAX f32 reference matching the PyTorch module at eval time."""
    B = x.shape[0]
    h = x.reshape(B, -1).astype(jnp.float32)
    h = jnp.maximum(h @ params["w1"].T.astype(jnp.float32) + params["b1"], 0.0)
    h = jnp.maximum(h @ params["w2"].T.astype(jnp.float32) + params["b2"], 0.0)
    return h @ params["w3"].T.astype(jnp.float32) + params["b3"]


def _init_params(key, enc_out_size, head_config):
    """Deterministic synthetic parameters in PyTorch nn.Linear layout (out, in)."""
    dims = [enc_out_size] + list(head_config) + [1]
    params = {}
    for i, (fin, fout) in enumerate(zip(dims[:-1], dims[1:]), start=1):
        key, kw, kb = jax.random.split(key, 3)
        bound = 1.0 / (fin ** 0.5)
        params[f"w{i}"] = jax.random.uniform(
            kw, (fout, fin), jnp.float32, minval=-bound, maxval=bound)
        params[f"b{i}"] = jax.random.uniform(
            kb, (fout,), jnp.float32, minval=-bound, maxval=bound)
    return params


if __name__ == "__main__":
    # Encoder output (B, C, H, W); enc_out_size = C*H*W, head_config = [32, 16].
    B, C, H, W = 2, 4, 4, 4
    enc_out_size = C * H * W          # 64
    head_config = [32, 16]

    key = jax.random.PRNGKey(0)
    key, kx, kx2 = jax.random.split(key, 3)
    params = _init_params(key, enc_out_size, head_config)
    x = jax.random.normal(kx, (B, C, H, W), jnp.float32)
    ref = _reference_forward(x, params)

    # Exact-numerics path: f32 MXU feed vs the f32 PyTorch-equivalent reference.
    y32 = jax.block_until_ready(
        regression_head_forward(x, params, mxu_dtype=jnp.float32))
    assert y32.shape == (B, 1), y32.shape
    assert jnp.allclose(y32, ref, atol=1e-4, rtol=1e-4), (y32, ref)

    # Perf-default bf16 MXU feed, signed off against the SAME f32 reference
    # (only MXU-feed rounding differs; accumulation stays f32).
    y16 = jax.block_until_ready(regression_head_forward(x, params))
    assert y16.shape == (B, 1), y16.shape
    assert jnp.allclose(y16, ref, atol=5e-2, rtol=5e-2), (y16, ref)

    # Multi-tile path: >= 2 batch tiles plus a masked partial last tile.
    B2 = 20
    x2 = jax.random.normal(kx2, (B2, C, H, W), jnp.float32)
    y2 = jax.block_until_ready(
        regression_head_forward(x2, params, mxu_dtype=jnp.float32))
    ref2 = _reference_forward(x2, params)
    assert y2.shape == (B2, 1), y2.shape
    assert jnp.allclose(y2, ref2, atol=1e-4, rtol=1e-4), (y2, ref2)

    print("KERNEL_OK")
</pallas_src>

<mosaic_0001>
module attributes {stable_mosaic.version = 11 : i64} {
  func.func @_mlp_head_kernel(%arg0: i32, %arg1: memref<2x64xf32, #tpu.memory_space<vmem>>, %arg2: memref<32x64xf32, #tpu.memory_space<vmem>>, %arg3: memref<1x32xf32, #tpu.memory_space<vmem>>, %arg4: memref<16x32xf32, #tpu.memory_space<vmem>>, %arg5: memref<1x16xf32, #tpu.memory_space<vmem>>, %arg6: memref<1x16xf32, #tpu.memory_space<vmem>>, %arg7: memref<1x1xf32, #tpu.memory_space<vmem>>, %arg8: memref<1x1x2xf32, #tpu.memory_space<vmem>>) attributes {dimension_semantics = [#tpu.dimension_semantics<parallel>], iteration_bounds = array<i64: 1>, scalar_prefetch = 0 : i64, scratch_operands = 0 : i64, tpu.core_type = #tpu.core_type<tc>, window_params = [{transform_indices = @transform_0, window_bounds = array<i64: 2, 64>}, {pipeline_mode = #tpu.pipeline_mode<synchronous>, transform_indices = @transform_1, window_bounds = array<i64: 32, 64>}, {pipeline_mode = #tpu.pipeline_mode<synchronous>, transform_indices = @transform_2, window_bounds = array<i64: 1, 32>}, {pipeline_mode = #tpu.pipeline_mode<synchronous>, transform_indices = @transform_3, window_bounds = array<i64: 16, 32>}, {pipeline_mode = #tpu.pipeline_mode<synchronous>, transform_indices = @transform_4, window_bounds = array<i64: 1, 16>}, {pipeline_mode = #tpu.pipeline_mode<synchronous>, transform_indices = @transform_5, window_bounds = array<i64: 1, 16>}, {pipeline_mode = #tpu.pipeline_mode<synchronous>, transform_indices = @transform_6, window_bounds = array<i64: 1, 1>}, {transform_indices = @transform_7, window_bounds = array<i64: 1, 1, 2>}]} {
    %c0 = arith.constant 0 : index
    %c0_0 = arith.constant 0 : index
    %0 = vector.load %arg1[%c0, %c0_0] : memref<2x64xf32, #tpu.memory_space<vmem>>, vector<2x64xf32>
    %c0_1 = arith.constant 0 : index
    %c0_2 = arith.constant 0 : index
    %1 = vector.load %arg2[%c0_1, %c0_2] : memref<32x64xf32, #tpu.memory_space<vmem>>, vector<32x64xf32>
    %cst = arith.constant dense<0.000000e+00> : vector<2x32xf32>
    %2 = tpu.matmul %0, %1, %cst {dimension_numbers = #tpu.dot_dimension_numbers<[1], [1], [0], [0], [0, 0, 1, 0], [], []>} : vector<2x64xf32>, vector<32x64xf32>, vector<2x32xf32> -> vector<2x32xf32>
    %c0_3 = arith.constant 0 : index
    %c0_4 = arith.constant 0 : index
    %3 = vector.load %arg3[%c0_3, %c0_4] : memref<1x32xf32, #tpu.memory_space<vmem>>, vector<1x32xf32>
    %4 = vector.broadcast %3 : vector<1x32xf32> to vector<2x32xf32>
    %5 = arith.addf %2, %4 : vector<2x32xf32>
    %cst_5 = arith.constant 0.000000e+00 : f32
    %6 = vector.broadcast %cst_5 : f32 to vector<2x32xf32>
    %7 = arith.maximumf %5, %6 : vector<2x32xf32>
    %c0_6 = arith.constant 0 : index
    %c0_7 = arith.constant 0 : index
    %8 = vector.load %arg4[%c0_6, %c0_7] : memref<16x32xf32, #tpu.memory_space<vmem>>, vector<16x32xf32>
    %cst_8 = arith.constant dense<0.000000e+00> : vector<2x16xf32>
    %9 = tpu.matmul %7, %8, %cst_8 {dimension_numbers = #tpu.dot_dimension_numbers<[1], [1], [0], [0], [0, 0, 1, 0], [], []>} : vector<2x32xf32>, vector<16x32xf32>, vector<2x16xf32> -> vector<2x16xf32>
    %c0_9 = arith.constant 0 : index
    %c0_10 = arith.constant 0 : index
    %10 = vector.load %arg5[%c0_9, %c0_10] : memref<1x16xf32, #tpu.memory_space<vmem>>, vector<1x16xf32>
    %11 = vector.broadcast %10 : vector<1x16xf32> to vector<2x16xf32>
    %12 = arith.addf %9, %11 : vector<2x16xf32>
    %cst_11 = arith.constant 0.000000e+00 : f32
    %13 = vector.broadcast %cst_11 : f32 to vector<2x16xf32>
    %14 = arith.maximumf %12, %13 : vector<2x16xf32>
    %c0_12 = arith.constant 0 : index
    %c0_13 = arith.constant 0 : index
    %15 = vector.load %arg6[%c0_12, %c0_13] : memref<1x16xf32, #tpu.memory_space<vmem>>, vector<1x16xf32>
    %cst_14 = arith.constant dense<0.000000e+00> : vector<1x2xf32>
    %16 = tpu.matmul %15, %14, %cst_14 {dimension_numbers = #tpu.dot_dimension_numbers<[1], [1], [0], [0], [0, 0, 1, 0], [], []>} : vector<1x16xf32>, vector<2x16xf32>, vector<1x2xf32> -> vector<1x2xf32>
    %c0_15 = arith.constant 0 : index
    %c0_16 = arith.constant 0 : index
    %17 = vector.load %arg7[%c0_15, %c0_16] : memref<1x1xf32, #tpu.memory_space<vmem>>, vector<1x1xf32>
    %18 = vector.broadcast %17 : vector<1x1xf32> to vector<1x2xf32>
    %19 = arith.addf %16, %18 : vector<1x2xf32>
    %c0_17 = arith.constant 0 : index
    %c0_18 = arith.constant 0 : index
    %c0_19 = arith.constant 0 : index
    %20 = vector.load %arg8[%c0_17, %c0_18, %c0_19] : memref<1x1x2xf32, #tpu.memory_space<vmem>>, vector<1x1x2xf32>
    %21 = vector.shape_cast %20 : vector<1x1x2xf32> to vector<1x2xf32>
    %22 = vector.shape_cast %19 : vector<1x2xf32> to vector<1x1x2xf32>
    tpu.vector_store %arg8[%c0_17, %c0_18, %c0_19], %22 {strides = array<i32>} : memref<1x1x2xf32, #tpu.memory_space<vmem>>, vector<1x1x2xf32>,
    return
  }
  func.func @transform_0(%arg0: i32) -> (i32, i32) {
    %c0_i32 = arith.constant 0 : i32
    %c0_i32_0 = arith.constant 0 : i32
    return %arg0, %c0_i32 : i32, i32
  }
  func.func @transform_1(%arg0: i32) -> (i32, i32) {
    %c0_i32 = arith.constant 0 : i32
    %c0_i32_0 = arith.constant 0 : i32
    %c0_i32_1 = arith.constant 0 : i32
    return %c0_i32, %c0_i32_0 : i32, i32
  }
  func.func @transform_2(%arg0: i32) -> (i32, i32) {
    %c0_i32 = arith.constant 0 : i32
    %c0_i32_0 = arith.constant 0 : i32
    %c0_i32_1 = arith.constant 0 : i32
    return %c0_i32, %c0_i32_0 : i32, i32
  }
  func.func @transform_3(%arg0: i32) -> (i32, i32) {
    %c0_i32 = arith.constant 0 : i32
    %c0_i32_0 = arith.constant 0 : i32
    %c0_i32_1 = arith.constant 0 : i32
    return %c0_i32, %c0_i32_0 : i32, i32
  }
  func.func @transform_4(%arg0: i32) -> (i32, i32) {
    %c0_i32 = arith.constant 0 : i32
    %c0_i32_0 = arith.constant 0 : i32
    %c0_i32_1 = arith.constant 0 : i32
    return %c0_i32, %c0_i32_0 : i32, i32
  }
  func.func @transform_5(%arg0: i32) -> (i32, i32) {
    %c0_i32 = arith.constant 0 : i32
    %c0_i32_0 = arith.constant 0 : i32
    %c0_i32_1 = arith.constant 0 : i32
    return %c0_i32, %c0_i32_0 : i32, i32
  }
  func.func @transform_6(%arg0: i32) -> (i32, i32) {
    %c0_i32 = arith.constant 0 : i32
    %c0_i32_0 = arith.constant 0 : i32
    %c0_i32_1 = arith.constant 0 : i32
    return %c0_i32, %c0_i32_0 : i32, i32
  }
  func.func @transform_7(%arg0: i32) -> (i32, i32, i32) {
    %c0_i32 = arith.constant 0 : i32
    %c0_i32_0 = arith.constant 0 : i32
    %c0_i32_1 = arith.constant 0 : i32
    return %arg0, %c0_i32, %c0_i32_0 : i32, i32, i32
  }
}

</mosaic_0001>

<llo_original>
// kernel: tpu_custom_call.1
$region0: #{tpu_custom_call.1}
  #allocation0 [shape = 'u32[]', space=smem, size = 0x4, offset = 0x4, fixed_abs, tag = 'smem constant byte address 0x4 - core index']
  #allocation1 [shape = 'u32[144,128]{1,0:T(1,128)}', space=vmem, size = 0x12000, scoped, tag = 'internal scratch']
  #allocation2 [shape = 'f32[1,1]{1,0:T(1,128)S(1)}', space=vmem, size = 0x200, scoped, tag = 'scoped memory for tpu_custom_call.1']
  %s0 = inlined_call_operand.vmem [shape: f32[2,64], index: 0, kind: input, shape index: {}]
  %s1 = inlined_call_operand.hbm [shape: f32[32,64], index: 1, kind: input, shape index: {}]
  %s2 = inlined_call_operand.vmem [shape: f32[1,32], index: 2, kind: input, shape index: {}]
  %s3 = inlined_call_operand.hbm [shape: f32[16,32], index: 3, kind: input, shape index: {}]
  %s4 = inlined_call_operand.vmem [shape: f32[1,16], index: 4, kind: input, shape index: {}]
  %s5 = inlined_call_operand.vmem [shape: f32[1,16], index: 5, kind: input, shape index: {}]
  %s6 = inlined_call_operand.<no memory space> [shape: f32[1,1], index: 6, kind: input, shape index: {}]
  %s7 = inlined_call_operand.hbm [shape: f32[1,1,2], index: 7, kind: output, shape index: {}]
  %s8 = sld [smem:[#allocation0]]
  $region46: #{tpu_custom_call.1} parent=0
    _
  %s10 = ssub.s32 1, %s8
  %s11 = scalar_select 0, %s10, %s8
  %v12 = vstv %s6
  %13 = vst [vmem:[#allocation2] sm:$0x1] %v12
  $region1: #{tpu_custom_call.1} parent=0
    #allocation3 [shape = 'u8[16384]{0}', space=vmem, size = 0x4000, scoped, tag = 'input window, operand 1, single buffered']
    #allocation4 [shape = 's32[1]{0}', space=sflag, size = 0x4, scoped, tag = 'scoped memory for tpu_custom_call.1']
    #allocation5 [shape = 's32[1]{0}', space=sflag, size = 0x4, scoped, tag = 'scoped memory for tpu_custom_call.1']
    #allocation6 [shape = 'u8[8192]{0}', space=vmem, size = 0x2000, scoped, tag = 'input window, operand 3, single buffered']
    #allocation7 [shape = 's32[1]{0}', space=sflag, size = 0x4, scoped, tag = 'scoped memory for tpu_custom_call.1']
    #allocation8 [shape = 'u8[512]{0}', space=vmem, size = 0x400, scoped, tag = 'output window, operand 0, single buffered']
    %14 = vsyncpa [#allocation4], 0
    %15 = vsyncpa [#allocation7], 0
    %16 = vsyncpa [#allocation5], 0
    // Predicated region
    $region2: #{tpu_custom_call.1} parent=1 // pred_check
      _
    $region3: #{tpu_custom_call.1} parent=1 // pred_check_branch
      %18 = sbr.rel (0) target = $region5
    $region4: #{tpu_custom_call.1} parent=1 // pred_region
      _
    $region5: #{tpu_custom_call.1} parent=1 // pred_fallthru
      _
    // Predicated region
    $region6: #{tpu_custom_call.1} parent=1 // pred_check
      _
    $region7: #{tpu_custom_call.1} parent=1 // pred_check_branch
      %20 = sbr.rel (0) target = $region9
    $region8: #{tpu_custom_call.1} parent=1 // pred_region
      %s22 = ssub.s32 512, 512
      %23 = vsyncadd [#allocation4], %s22
      %s24 = sshll.u32 [#allocation3], 4
      %s25 = int_to_ptr.vmem [resolvable:$true] %s24
      %30 = dma.hbm_to_vmem [thread:$0]  %s1, 512, %s25, [#allocation4], 128, 128, 8
    $region9: #{tpu_custom_call.1} parent=1 // pred_fallthru
      _
    // Predicated region
    $region10: #{tpu_custom_call.1} parent=1 // pred_check
      _
    $region11: #{tpu_custom_call.1} parent=1 // pred_check_branch
      %32 = sbr.rel (0) target = $region13
    $region12: #{tpu_custom_call.1} parent=1 // pred_region
      _
    $region13: #{tpu_custom_call.1} parent=1 // pred_fallthru
      _
    // Predicated region
    $region14: #{tpu_custom_call.1} parent=1 // pred_check
      _
    $region15: #{tpu_custom_call.1} parent=1 // pred_check_branch
      %34 = sbr.rel (0) target = $region17
    $region16: #{tpu_custom_call.1} parent=1 // pred_region
      %s36 = ssub.s32 256, 256
      %37 = vsyncadd [#allocation7], %s36
      %s38 = sshll.u32 [#allocation6], 4
      %s39 = int_to_ptr.vmem [resolvable:$true] %s38
      %44 = dma.hbm_to_vmem [thread:$0]  %s3, 256, %s39, [#allocation7], 128, 128, 8
    $region17: #{tpu_custom_call.1} parent=1 // pred_fallthru
      _
    // Predicated region
    $region18: #{tpu_custom_call.1} parent=1 // pred_check
      _
    $region19: #{tpu_custom_call.1} parent=1 // pred_check_branch
      %46 = sbr.rel (0) target = $region21
    $region20: #{tpu_custom_call.1} parent=1 // pred_region
      _
    $region21: #{tpu_custom_call.1} parent=1 // pred_fallthru
      _
    // Predicated region
    $region22: #{tpu_custom_call.1} parent=1 // pred_check
      _
    $region23: #{tpu_custom_call.1} parent=1 // pred_check_branch
      %48 = sbr.rel (0) target = $region25
    $region24: #{tpu_custom_call.1} parent=1 // pred_region
      _
    $region25: #{tpu_custom_call.1} parent=1 // pred_fallthru
      _
    // Predicated region
    $region26: #{tpu_custom_call.1} parent=1 // pred_check
      _
    $region27: #{tpu_custom_call.1} parent=1 // pred_check_branch
      %50 = sbr.rel (0) target = $region29
    $region28: #{tpu_custom_call.1} parent=1 // pred_region
      _
    $region29: #{tpu_custom_call.1} parent=1 // pred_fallthru
      _
    // Predicated region
    $region30: #{tpu_custom_call.1} parent=1 // pred_check
      _
    $region31: #{tpu_custom_call.1} parent=1 // pred_check_branch
      %52 = sbr.rel (0) target = $region33
    $region32: #{tpu_custom_call.1} parent=1 // pred_region
      %53 = dma.done [#allocation4], 512
    $region33: #{tpu_custom_call.1} parent=1 // pred_fallthru
      _
    // Predicated region
    $region34: #{tpu_custom_call.1} parent=1 // pred_check
      _
    $region35: #{tpu_custom_call.1} parent=1 // pred_check_branch
      %55 = sbr.rel (0) target = $region37
    $region36: #{tpu_custom_call.1} parent=1 // pred_region
      %56 = dma.done [#allocation7], 256
    $region37: #{tpu_custom_call.1} parent=1 // pred_fallthru
      _
    %v57 = vld [vmem:[%s0] sm:$0x3]
    %v58 = vld [vmem:[#allocation3] sm:$0xff]
    %v59 = vld [vmem:[#allocation3 + $0x8] sm:$0xff]
    %v60 = vld [vmem:[#allocation3 + $0x10] sm:$0xff]
    %v61 = vld [vmem:[#allocation3 + $0x18] sm:$0xff]
    %v62 = vld [vmem:[%s2] sm:$0x1]
    %v64 = vlaneseq
    %v65 = vshrl.u32 %v64, 7
    %v66 = vsub.s32 0, %v65
    %v67 = vrot.slane %v62, %v66
    %vm69 = vcmask 523264
    %v71 = vsel %vm69, %v57, 0
    %v74 = vsel %vm69, %v58, 0
    %v77 = vsel %vm69, %v59, 0
    %v80 = vsel %vm69, %v60, 0
    %v83 = vsel %vm69, %v61, 0
    %85 = vmatprep.subr.mxu0 0.0
    %86 = vmatpush1.xpose.msra.mxu0 0.0
    %87 = vmatprep.subr.mxu0 0.0
    %88 = vmatpush1.xpose.msra.mxu0 0.0
    %89 = vmatprep.subr.mxu0 0.0
    %90 = vmatpush1.xpose.msra.mxu0 0.0
    %91 = vmatprep.subr.mxu0 0.0
    %92 = vmatpush1.xpose.msra.mxu0 0.0
    %93 = vmatprep.subr.mxu0 0.0
    %94 = vmatpush1.xpose.msra.mxu0 0.0
    %95 = vmatprep.subr.mxu0 0.0
    %96 = vmatpush1.xpose.msra.mxu0 0.0
    %97 = vmatprep.subr.mxu0 0.0
    %98 = vmatpush1.xpose.msra.mxu0 0.0
    %99 = vmatprep.subr.mxu0 0.0
    %100 = vmatpush1.xpose.msra.mxu0 0.0
    %101 = vmatprep.subr.mxu0 0.0
    %102 = vmatpush1.xpose.msra.mxu0 0.0
    %103 = vmatprep.subr.mxu0 0.0
    %104 = vmatpush1.xpose.msra.mxu0 0.0
    %105 = vmatprep.subr.mxu0 0.0
    %106 = vmatpush1.xpose.msra.mxu0 0.0
    %107 = vmatprep.subr.mxu0 0.0
    %108 = vmatpush1.xpose.msra.mxu0 0.0
    %109 = vmatprep.subr.mxu0 0.0
    %110 = vmatpush1.xpose.msra.mxu0 %v83
    %111 = vmatprep.subr.mxu0 0.0
    %112 = vmatpush1.xpose.msra.mxu0 %v80
    %113 = vmatprep.subr.mxu0 0.0
    %114 = vmatpush1.xpose.msra.mxu0 %v77
    %115 = vmatprep.subr.mxu0 0.0
    %116 = vmatpush1.xpose.msra.mxu0 %v74
    %117 = vmatprep.subr.mxu0 0.0
    %118 = vmatpush2.xpose.msra.mxu0 0.0
    %119 = vmatprep.subr.mxu0 0.0
    %120 = vmatpush2.xpose.msra.mxu0 0.0
    %121 = vmatprep.subr.mxu0 0.0
    %122 = vmatpush2.xpose.msra.mxu0 0.0
    %123 = vmatprep.subr.mxu0 0.0
    %124 = vmatpush2.xpose.msra.mxu0 0.0
    %125 = vmatprep.subr.mxu0 0.0
    %126 = vmatpush2.xpose.msra.mxu0 0.0
    %127 = vmatprep.subr.mxu0 0.0
    %128 = vmatpush2.xpose.msra.mxu0 0.0
    %129 = vmatprep.subr.mxu0 0.0
    %130 = vmatpush2.xpose.msra.mxu0 0.0
    %131 = vmatprep.subr.mxu0 0.0
    %132 = vmatpush2.xpose.msra.mxu0 0.0
    %133 = vmatprep.subr.mxu0 0.0
    %134 = vmatpush2.xpose.msra.mxu0 0.0
    %135 = vmatprep.subr.mxu0 0.0
    %136 = vmatpush2.xpose.msra.mxu0 0.0
    %137 = vmatprep.subr.mxu0 0.0
    %138 = vmatpush2.xpose.msra.mxu0 0.0
    %139 = vmatprep.subr.mxu0 0.0
    %140 = vmatpush2.xpose.msra.mxu0 0.0
    %141 = vmatprep.subr.mxu0 0.0
    %142 = vmatpush2.xpose.msra.mxu0 0.0
    %143 = vmatprep.subr.mxu0 0.0
    %144 = vmatpush2.xpose.msra.mxu0 0.0
    %145 = vmatprep.subr.mxu0 0.0
    %146 = vmatpush2.xpose.msra.mxu0 0.0
    %147 = vmatprep.subr.mxu0 0.0
    %148 = vmatpush2.xpose.msra.mxu0 0.0
    %149 = vmatprep.mubr.f32.mxu0 0.0
    %150 = vmatmul.mubr.f32.gmra.mxu0 %v71
    %v151 = vpop.f32.mrf.mxu0
    %v152 = vadd.f32 %v67, %v151
    %v153 = vpop.f32.mrf.mxu0
    %154 = vdwg.mxu0
    %v155 = vmax.f32 %v152, 0.0
    %v156 = vld [vmem:[#allocation6] sm:$0xff]
    %v157 = vld [vmem:[#allocation6 + $0x8] sm:$0xff]
    %v158 = vld [vmem:[%s4] sm:$0x1]
    %v160 = vlaneseq
    %v161 = vshrl.u32 %v160, 7
    %v162 = vsub.s32 0, %v161
    %v163 = vrot.slane %v158, %v162
    %vm165 = vcmask 261120
    %v167 = vsel %vm165, %v155, 0
    %v170 = vsel %vm165, %v156, 0
    %v173 = vsel %vm165, %v157, 0
    %175 = vmatprep.subr.mxu0 0.0
    %176 = vmatpush1.xpose.msra.mxu0 0.0
    %177 = vmatprep.subr.mxu0 0.0
    %178 = vmatpush1.xpose.msra.mxu0 0.0
    %179 = vmatprep.subr.mxu0 0.0
    %180 = vmatpush1.xpose.msra.mxu0 0.0
    %181 = vmatprep.subr.mxu0 0.0
    %182 = vmatpush1.xpose.msra.mxu0 0.0
    %183 = vmatprep.subr.mxu0 0.0
    %184 = vmatpush1.xpose.msra.mxu0 0.0
    %185 = vmatprep.subr.mxu0 0.0
    %186 = vmatpush1.xpose.msra.mxu0 0.0
    %187 = vmatprep.subr.mxu0 0.0
    %188 = vmatpush1.xpose.msra.mxu0 0.0
    %189 = vmatprep.subr.mxu0 0.0
    %190 = vmatpush1.xpose.msra.mxu0 0.0
    %191 = vmatprep.subr.mxu0 0.0
    %192 = vmatpush1.xpose.msra.mxu0 0.0
    %193 = vmatprep.subr.mxu0 0.0
    %194 = vmatpush1.xpose.msra.mxu0 0.0
    %195 = vmatprep.subr.mxu0 0.0
    %196 = vmatpush1.xpose.msra.mxu0 0.0
    %197 = vmatprep.subr.mxu0 0.0
    %198 = vmatpush1.xpose.msra.mxu0 0.0
    %199 = vmatprep.subr.mxu0 0.0
    %200 = vmatpush1.xpose.msra.mxu0 0.0
    %201 = vmatprep.subr.mxu0 0.0
    %202 = vmatpush1.xpose.msra.mxu0 0.0
    %203 = vmatprep.subr.mxu0 0.0
    %204 = vmatpush1.xpose.msra.mxu0 %v173
    %205 = vmatprep.subr.mxu0 0.0
    %206 = vmatpush1.xpose.msra.mxu0 %v170
    %207 = vmatprep.subr.mxu0 0.0
    %208 = vmatpush2.xpose.msra.mxu0 0.0
    %209 = vmatprep.subr.mxu0 0.0
    %210 = vmatpush2.xpose.msra.mxu0 0.0
    %211 = vmatprep.subr.mxu0 0.0
    %212 = vmatpush2.xpose.msra.mxu0 0.0
    %213 = vmatprep.subr.mxu0 0.0
    %214 = vmatpush2.xpose.msra.mxu0 0.0
    %215 = vmatprep.subr.mxu0 0.0
    %216 = vmatpush2.xpose.msra.mxu0 0.0
    %217 = vmatprep.subr.mxu0 0.0
    %218 = vmatpush2.xpose.msra.mxu0 0.0
    %219 = vmatprep.subr.mxu0 0.0
    %220 = vmatpush2.xpose.msra.mxu0 0.0
    %221 = vmatprep.subr.mxu0 0.0
    %222 = vmatpush2.xpose.msra.mxu0 0.0
    %223 = vmatprep.subr.mxu0 0.0
    %224 = vmatpush2.xpose.msra.mxu0 0.0
    %225 = vmatprep.subr.mxu0 0.0
    %226 = vmatpush2.xpose.msra.mxu0 0.0
    %227 = vmatprep.subr.mxu0 0.0
    %228 = vmatpush2.xpose.msra.mxu0 0.0
    %229 = vmatprep.subr.mxu0 0.0
    %230 = vmatpush2.xpose.msra.mxu0 0.0
    %231 = vmatprep.subr.mxu0 0.0
    %232 = vmatpush2.xpose.msra.mxu0 0.0
    %233 = vmatprep.subr.mxu0 0.0
    %234 = vmatpush2.xpose.msra.mxu0 0.0
    %235 = vmatprep.subr.mxu0 0.0
    %236 = vmatpush2.xpose.msra.mxu0 0.0
    %237 = vmatprep.subr.mxu0 0.0
    %238 = vmatpush2.xpose.msra.mxu0 0.0
    %239 = vmatprep.mubr.f32.mxu0 0.0
    %240 = vmatmul.mubr.f32.gmra.mxu0 %v167
    %v241 = vpop.f32.mrf.mxu0
    %v242 = vadd.f32 %v163, %v241
    %v243 = vpop.f32.mrf.mxu0
    %244 = vdwg.mxu0
    %v245 = vmax.f32 %v242, 0.0
    %v246 = vld [vmem:[%s5] sm:$0x1]
    %v247 = vld [vmem:[#allocation2] sm:$0x1]
    %249 = vset.pattern.permute.xlu0 0
    %250 = vperm.xlu0 %249, %v247
    %v251 = vpop.permute.xlu0 %250
    %v253 = vlaneseq
    %v254 = vshrl.u32 %v253, 7
    %v255 = vsub.s32 0, %v254
    %v256 = vrot.slane %v251, %v255
    %vm257 = vcmask 130048
    %v259 = vsel %vm257, %v246, 0
    %v262 = vsel %vm257, %v245, 0
    %264 = vmatprep.subr.mxu0 0.0
    %265 = vmatpush1.xpose.msra.mxu0 0.0
    %266 = vmatprep.subr.mxu0 0.0
    %267 = vmatpush1.xpose.msra.mxu0 0.0
    %268 = vmatprep.subr.mxu0 0.0
    %269 = vmatpush1.xpose.msra.mxu0 0.0
    %270 = vmatprep.subr.mxu0 0.0
    %271 = vmatpush1.xpose.msra.mxu0 0.0
    %272 = vmatprep.subr.mxu0 0.0
    %273 = vmatpush1.xpose.msra.mxu0 0.0
    %274 = vmatprep.subr.mxu0 0.0
    %275 = vmatpush1.xpose.msra.mxu0 0.0
    %276 = vmatprep.subr.mxu0 0.0
    %277 = vmatpush1.xpose.msra.mxu0 0.0
    %278 = vmatprep.subr.mxu0 0.0
    %279 = vmatpush1.xpose.msra.mxu0 0.0
    %280 = vmatprep.subr.mxu0 0.0
    %281 = vmatpush1.xpose.msra.mxu0 0.0
    %282 = vmatprep.subr.mxu0 0.0
    %283 = vmatpush1.xpose.msra.mxu0 0.0
    %284 = vmatprep.subr.mxu0 0.0
    %285 = vmatpush1.xpose.msra.mxu0 0.0
    %286 = vmatprep.subr.mxu0 0.0
    %287 = vmatpush1.xpose.msra.mxu0 0.0
    %288 = vmatprep.subr.mxu0 0.0
    %289 = vmatpush1.xpose.msra.mxu0 0.0
    %290 = vmatprep.subr.mxu0 0.0
    %291 = vmatpush1.xpose.msra.mxu0 0.0
    %292 = vmatprep.subr.mxu0 0.0
    %293 = vmatpush1.xpose.msra.mxu0 0.0
    %294 = vmatprep.subr.mxu0 0.0
    %295 = vmatpush1.xpose.msra.mxu0 %v262
    %296 = vmatprep.subr.mxu0 0.0
    %297 = vmatpush2.xpose.msra.mxu0 0.0
    %298 = vmatprep.subr.mxu0 0.0
    %299 = vmatpush2.xpose.msra.mxu0 0.0
    %300 = vmatprep.subr.mxu0 0.0
    %301 = vmatpush2.xpose.msra.mxu0 0.0
    %302 = vmatprep.subr.mxu0 0.0
    %303 = vmatpush2.xpose.msra.mxu0 0.0
    %304 = vmatprep.subr.mxu0 0.0
    %305 = vmatpush2.xpose.msra.mxu0 0.0
    %306 = vmatprep.subr.mxu0 0.0
    %307 = vmatpush2.xpose.msra.mxu0 0.0
    %308 = vmatprep.subr.mxu0 0.0
    %309 = vmatpush2.xpose.msra.mxu0 0.0
    %310 = vmatprep.subr.mxu0 0.0
    %311 = vmatpush2.xpose.msra.mxu0 0.0
    %312 = vmatprep.subr.mxu0 0.0
    %313 = vmatpush2.xpose.msra.mxu0 0.0
    %314 = vmatprep.subr.mxu0 0.0
    %315 = vmatpush2.xpose.msra.mxu0 0.0
    %316 = vmatprep.subr.mxu0 0.0
    %317 = vmatpush2.xpose.msra.mxu0 0.0
    %318 = vmatprep.subr.mxu0 0.0
    %319 = vmatpush2.xpose.msra.mxu0 0.0
    %320 = vmatprep.subr.mxu0 0.0
    %321 = vmatpush2.xpose.msra.mxu0 0.0
    %322 = vmatprep.subr.mxu0 0.0
    %323 = vmatpush2.xpose.msra.mxu0 0.0
    %324 = vmatprep.subr.mxu0 0.0
    %325 = vmatpush2.xpose.msra.mxu0 0.0
    %326 = vmatprep.subr.mxu0 0.0
    %327 = vmatpush2.xpose.msra.mxu0 0.0
    %328 = vmatprep.mubr.f32.mxu0 0.0
    %329 = vmatmul.mubr.f32.gmra.mxu0 %v259
    %v330 = vpop.f32.mrf.mxu0
    %v331 = vadd.f32 %v256, %v330
    %v332 = vpop.f32.mrf.mxu0
    %333 = vdwg.mxu0
    %vm334 = vcmask 8192
    %335 = vst.msk [vmem:[#allocation8] sm:$0x1] %vm334, %v331
    // Predicated region
    $region38: #{tpu_custom_call.1} parent=1 // pred_check
      _
    $region39: #{tpu_custom_call.1} parent=1 // pred_check_branch
      %337 = sbr.rel (0) target = $region41
    $region40: #{tpu_custom_call.1} parent=1 // pred_region
      %s339 = ssub.s32 16, 16
      %340 = vsyncadd [#allocation5], %s339
      %s342 = sshll.u32 [#allocation8], 4
      %s343 = int_to_ptr.vmem [resolvable:$true] %s342
      %345 = dma.vmem_to_hbm [thread:$0]  %s343, 16, %s7, [#allocation5]
    $region41: #{tpu_custom_call.1} parent=1 // pred_fallthru
      _
    // Predicated region
    $region42: #{tpu_custom_call.1} parent=1 // pred_check
      _
    $region43: #{tpu_custom_call.1} parent=1 // pred_check_branch
      %347 = sbr.rel (0) target = $region45
    $region44: #{tpu_custom_call.1} parent=1 // pred_region
      %348 = dma.done [#allocation5], 16
    $region45: #{tpu_custom_call.1} parent=1 // pred_fallthru
      _
    %349 = vsyncpa [#allocation4], 1
    %350 = vsyncpa [#allocation7], 1
    %351 = vsyncpa [#allocation5], 1

</llo_original>
